<compile_context>
chip_gen: v7x
topology: tpu7x:2x2x1
jax: 0.10.0
libtpu: 0.0.40
codegen_flags: <defaults>
</compile_context>

<pallas_src>
import jax
import jax.numpy as jnp
from jax.experimental import pallas as pl
from jax.experimental.pallas import tpu as pltpu  # noqa: F401  (TPU backend)

N = 10       # n
NHEAD = 10   # nhead  (the reinterpretation requires n == nhead, as in the spec)
B = 1        # batch_size

assert N == NHEAD, "reinterpretation mixes N- and NHEAD-length vectors"

# Packed-slab layout (sublane, lane), f32, zero elsewhere:
#   [ 0:10,  0:10]  kv_t            (kv transposed: kv_t[k, j] == kv[j, k])
#   [ 0:10, 16   ]  w_o.weight[0, 1:11]   (column)
#   [ 0:10, 17   ]  w_o.weight[0, 0:10]   (column)
#   [16:26,  0:10]  masked_w = w_kv.weight[:, 0][None, :] * attn_mask
#   [32   ,  0:10]  q_feat * w_q[0, 0]
#   [33   ,  0:10]  q_feat * w_o.weight[0, 0]
#   [34   ,  0   ]  w_o.bias[0]
SLAB_ROWS = 40
SLAB_LANES = 128


def _model_kernel(packed_ref, out_ref):
    kv_t = packed_ref[0:N, 0:N]                      # (N, N)
    wo_rest_col = packed_ref[0:N, 16:17]             # (N, 1)  w_o[:, 1:]
    wo_head_col = packed_ref[0:NHEAD, 17:18]         # (H, 1)  w_o[:, :H]
    masked_w = packed_ref[16:16 + NHEAD, 0:NHEAD]    # (H, H)  wkv_row * mask
    qp_row = packed_ref[32:33, 0:N]                  # (1, N)  q * w_q
    vq_row = packed_ref[33:34, 0:N]                  # (1, N)  q * w_o[:, 0]
    wb = packed_ref[34:35, 0:1]                      # (1, 1)  w_o bias

    # scores[h] = (sum_j (q*w_q)[j] * kv[j,0]) * w_kv[h];  mask folded host-side
    s0 = jnp.sum(qp_row * kv_t[0:1, :], axis=-1, keepdims=True)      # (1, 1)
    attn_weight = s0 * masked_w                                       # (H, H)

    # softmax over the last dim (the module's `self.softmax(attn_weight, 3)`)
    m = jnp.max(attn_weight, axis=-1, keepdims=True)
    e = jnp.exp(attn_weight - m)
    p = e * pl.reciprocal(jnp.sum(e, axis=-1, keepdims=True), approx=True)

    # value projection: vproj[j] = q[j]*w_o[0,0] + sum_k kv[j,k]*w_o[0,1+k] + b
    vproj_row = (vq_row
                 + jnp.sum(kv_t * wo_rest_col, axis=0, keepdims=True)
                 + wb)                                                # (1, N)

    # attention output + final w_o projection, fused:
    #   final = sum_i w_o[0,i] * (sum_j p[i,j] * vproj[j]) + b
    t = jnp.sum(wo_head_col * p * vproj_row, axis=-1, keepdims=True)  # (H, 1)
    final = jnp.sum(t, axis=0, keepdims=True) + wb                    # (1, 1)

    # lane-dense store (value broadcast across all 128 lanes)
    out_ref[...] = jnp.broadcast_to(final, out_ref.shape)


def model_forward(q, v, attn_mask, kv_rand, params):
    del v  # `v` is an argument of the PyTorch forward but is never used.
    wq, wkv, wo_w, wo_b = params

    # Host-side packing (plain JAX, fused by XLA): fold w_q / w_o[:,0] into q,
    # fold w_kv into the mask, and place everything in one lane-dense slab so
    # the kernel issues a single input DMA.
    q_feat = q[0, :, 0].astype(jnp.float32)                     # (N,)
    packed = jnp.zeros((SLAB_ROWS, SLAB_LANES), dtype=jnp.float32)
    packed = packed.at[0:N, 0:N].set(kv_rand.T)
    packed = packed.at[0:N, 16].set(wo_w[0, 1:])
    # TODO(synk): the second self.w_o call in the PyTorch code is applied to a
    # tensor with nhead (10) features, not nhead+1 (11); we use the first nhead
    # columns of w_o.weight for that projection.
    packed = packed.at[0:NHEAD, 17].set(wo_w[0, :NHEAD])
    packed = packed.at[16:16 + NHEAD, 0:NHEAD].set(wkv[:, 0][None, :] * attn_mask)
    packed = packed.at[32, 0:N].set(q_feat * wq[0, 0])
    packed = packed.at[33, 0:N].set(q_feat * wo_w[0, 0])
    packed = packed.at[34, 0].set(wo_b[0])

    # Gridless call: whole-array block in VMEM, 1 input DMA, 1 lane-dense
    # output DMA.  Cost estimate keeps XLA from serializing neighbors.
    out = pl.pallas_call(
        _model_kernel,
        out_shape=jax.ShapeDtypeStruct((1, SLAB_LANES), jnp.float32),
        cost_estimate=pl.CostEstimate(
            flops=1200,
            transcendentals=NHEAD * NHEAD + NHEAD,
            bytes_accessed=SLAB_ROWS * SLAB_LANES * 4 + SLAB_LANES * 4,
        ),
    )(packed)

    # Module's final output shape: (h, 1, n_head*1) -> w_o -> (h, 1, 1), h = 1.
    return out[0:1, 0:1].reshape(1, 1, 1)


def _reference(q, attn_mask, kv_rand, params):
    """Pure-JAX reference of the same reinterpretation (for a sanity check)."""
    wq, wkv, wo_w, wo_b = params
    q_feat = q[0, :, 0:1]                                   # (N, 1)
    qp = q_feat * wq[0, 0]                                  # (N, 1)
    kvp = kv_rand[:, 0:1] * wkv[:, 0][None, :]              # (N, H)
    vproj = (q_feat * wo_w[0, 0]
             + kv_rand @ wo_w[0, 1:][:, None]
             + wo_b[0])                                     # (N, 1)
    scores = jnp.sum(qp * kvp, axis=0, keepdims=True)       # (1, H)
    aw = scores * attn_mask                                 # (H, H)
    p = jax.nn.softmax(aw, axis=-1)
    output = p @ vproj                                      # (H, 1)
    final = (jnp.sum(output * wo_w[0, :NHEAD][:, None], axis=0, keepdims=True)
             + wo_b[0])                                     # (1, 1)
    return final.reshape(1, 1, 1)


if __name__ == "__main__":
    key = jax.random.PRNGKey(0)
    k1, k2, k3, k4, k5, k6, k7 = jax.random.split(key, 7)

    # Inputs (shapes of the module's globals)
    q = jax.random.uniform(k1, (B, NHEAD, N), dtype=jnp.float32)
    v = jax.random.uniform(k2, (B, NHEAD, N), dtype=jnp.float32)   # unused
    attn_mask = jnp.ones((NHEAD, NHEAD), dtype=jnp.float32)
    # TODO(synk): torch.rand(self.n, self.n) inside forward is nondeterministic;
    # replaced by a deterministic array built here and passed in.
    kv_rand = jax.random.uniform(k3, (N, N), dtype=jnp.float32)

    # Parameters (nn.Linear-style init)
    wq = jax.random.uniform(k4, (1, 1), dtype=jnp.float32,
                            minval=-1.0, maxval=1.0)                 # Linear(1,1)
    wkv = jax.random.uniform(k5, (NHEAD, 1), dtype=jnp.float32,
                             minval=-1.0, maxval=1.0)                # Linear(1,nhead)
    bound_o = 1.0 / float(NHEAD + 1) ** 0.5
    wo_w = jax.random.uniform(k6, (1, NHEAD + 1), dtype=jnp.float32,
                              minval=-bound_o, maxval=bound_o)       # Linear(nhead+1,1)
    wo_b = jax.random.uniform(k7, (1,), dtype=jnp.float32,
                              minval=-bound_o, maxval=bound_o)

    params = (wq, wkv, wo_w, wo_b)
    out = model_forward(q, v, attn_mask, kv_rand, params)
    out = jax.block_until_ready(out)

    assert out.shape == (1, 1, 1), out.shape
    assert bool(jnp.all(jnp.isfinite(out)))
    ref = _reference(q, attn_mask, kv_rand, params)
    assert bool(jnp.allclose(out, ref, rtol=1e-2, atol=1e-2)), (out, ref)
    print("KERNEL_OK")
</pallas_src>

<mosaic_0001>
module attributes {stable_mosaic.version = 11 : i64} {
  func.func @_model_kernel(%arg0: memref<40x128xf32, #tpu.memory_space<vmem>>, %arg1: memref<1x128xf32, #tpu.memory_space<vmem>>) attributes {dimension_semantics = [], scalar_prefetch = 0 : i64, scratch_operands = 0 : i64, tpu.core_type = #tpu.core_type<tc>} {
    %c0 = arith.constant 0 : index
    %c0_0 = arith.constant 0 : index
    %0 = vector.load %arg0[%c0, %c0_0] : memref<40x128xf32, #tpu.memory_space<vmem>>, vector<10x10xf32>
    %c0_1 = arith.constant 0 : index
    %c16 = arith.constant 16 : index
    %1 = vector.load %arg0[%c0_1, %c16] : memref<40x128xf32, #tpu.memory_space<vmem>>, vector<10x1xf32>
    %c0_2 = arith.constant 0 : index
    %c17 = arith.constant 17 : index
    %2 = vector.load %arg0[%c0_2, %c17] : memref<40x128xf32, #tpu.memory_space<vmem>>, vector<10x1xf32>
    %c16_3 = arith.constant 16 : index
    %c0_4 = arith.constant 0 : index
    %3 = vector.load %arg0[%c16_3, %c0_4] : memref<40x128xf32, #tpu.memory_space<vmem>>, vector<10x10xf32>
    %c32 = arith.constant 32 : index
    %c0_5 = arith.constant 0 : index
    %4 = vector.load %arg0[%c32, %c0_5] : memref<40x128xf32, #tpu.memory_space<vmem>>, vector<1x10xf32>
    %c33 = arith.constant 33 : index
    %c0_6 = arith.constant 0 : index
    %5 = vector.load %arg0[%c33, %c0_6] : memref<40x128xf32, #tpu.memory_space<vmem>>, vector<1x10xf32>
    %c34 = arith.constant 34 : index
    %c0_7 = arith.constant 0 : index
    %6 = vector.load %arg0[%c34, %c0_7] : memref<40x128xf32, #tpu.memory_space<vmem>>, vector<1x1xf32>
    %7 = vector.extract_strided_slice %0 {offsets = [0, 0], sizes = [1, 10], strides = [1, 1]} : vector<10x10xf32> to vector<1x10xf32>
    %8 = arith.mulf %4, %7 : vector<1x10xf32>
    %cst = arith.constant dense<0.000000e+00> : vector<1xf32>
    %9 = vector.multi_reduction <add>, %8, %cst [1] : vector<1x10xf32> to vector<1xf32>
    %10 = vector.shape_cast %9 : vector<1xf32> to vector<1x1xf32>
    %11 = vector.broadcast %10 : vector<1x1xf32> to vector<10x10xf32>
    %12 = arith.mulf %11, %3 : vector<10x10xf32>
    %cst_8 = arith.constant dense<0xFF800000> : vector<10xf32>
    %13 = vector.multi_reduction <maximumf>, %12, %cst_8 [1] : vector<10x10xf32> to vector<10xf32>
    %14 = vector.shape_cast %13 : vector<10xf32> to vector<10x1xf32>
    %15 = vector.broadcast %14 : vector<10x1xf32> to vector<10x10xf32>
    %16 = arith.subf %12, %15 : vector<10x10xf32>
    %17 = math.exp %16 : vector<10x10xf32>
    %cst_9 = arith.constant dense<0.000000e+00> : vector<10xf32>
    %18 = vector.multi_reduction <add>, %17, %cst_9 [1] : vector<10x10xf32> to vector<10xf32>
    %19 = vector.shape_cast %18 : vector<10xf32> to vector<10x1xf32>
    %20 = tpu.reciprocal %19 {approx = true} : vector<10x1xf32> -> vector<10x1xf32>
    %21 = vector.broadcast %20 : vector<10x1xf32> to vector<10x10xf32>
    %22 = arith.mulf %17, %21 : vector<10x10xf32>
    %23 = vector.broadcast %1 : vector<10x1xf32> to vector<10x10xf32>
    %24 = arith.mulf %0, %23 : vector<10x10xf32>
    %cst_10 = arith.constant dense<0.000000e+00> : vector<10xf32>
    %25 = vector.multi_reduction <add>, %24, %cst_10 [0] : vector<10x10xf32> to vector<10xf32>
    %26 = vector.shape_cast %25 : vector<10xf32> to vector<1x10xf32>
    %27 = arith.addf %5, %26 : vector<1x10xf32>
    %28 = vector.broadcast %6 : vector<1x1xf32> to vector<1x10xf32>
    %29 = arith.addf %27, %28 : vector<1x10xf32>
    %30 = vector.broadcast %2 : vector<10x1xf32> to vector<10x10xf32>
    %31 = arith.mulf %30, %22 : vector<10x10xf32>
    %32 = vector.broadcast %29 : vector<1x10xf32> to vector<10x10xf32>
    %33 = arith.mulf %31, %32 : vector<10x10xf32>
    %cst_11 = arith.constant dense<0.000000e+00> : vector<10xf32>
    %34 = vector.multi_reduction <add>, %33, %cst_11 [1] : vector<10x10xf32> to vector<10xf32>
    %35 = vector.shape_cast %34 : vector<10xf32> to vector<10x1xf32>
    %cst_12 = arith.constant dense<0.000000e+00> : vector<1xf32>
    %36 = vector.multi_reduction <add>, %35, %cst_12 [0] : vector<10x1xf32> to vector<1xf32>
    %37 = vector.shape_cast %36 : vector<1xf32> to vector<1x1xf32>
    %38 = arith.addf %37, %6 : vector<1x1xf32>
    %39 = vector.shape_cast %38 : vector<1x1xf32> to vector<1x1xf32>
    %40 = vector.broadcast %39 : vector<1x1xf32> to vector<1x128xf32>
    %c0_13 = arith.constant 0 : index
    %c0_14 = arith.constant 0 : index
    %41 = vector.load %arg1[%c0_13, %c0_14] : memref<1x128xf32, #tpu.memory_space<vmem>>, vector<1x128xf32>
    tpu.vector_store %arg1[%c0_13, %c0_14], %40 {strides = array<i32>} : memref<1x128xf32, #tpu.memory_space<vmem>>, vector<1x128xf32>,
    return
  }
}

</mosaic_0001>

<llo_original>
// kernel: tpu_custom_call.1
$region0: #{tpu_custom_call.1}
  #allocation0 [shape = 'u32[]', space=smem, size = 0x4, offset = 0x4, fixed_abs, tag = 'smem constant byte address 0x4 - core index']
  #allocation1 [shape = 'u32[144,128]{1,0:T(1,128)}', space=vmem, size = 0x12000, scoped, tag = 'internal scratch']
  %s0 = inlined_call_operand.hbm [shape: f32[40,128], index: 0, kind: input, shape index: {}]
  %s1 = inlined_call_operand.hbm [shape: f32[1,128], index: 1, kind: output, shape index: {}]
  %s2 = sld [smem:[#allocation0]]
  $region18: #{tpu_custom_call.1} parent=0
    _
  %s4 = ssub.s32 1, %s2
  %s5 = scalar_select 0, %s4, %s2
  $region1: #{tpu_custom_call.1} parent=0
    #allocation2 [shape = 'u8[20480]{0}', space=vmem, size = 0x5000, scoped, tag = 'input window, operand 0, single buffered']
    #allocation3 [shape = 's32[1]{0}', space=sflag, size = 0x4, scoped, tag = 'scoped memory for tpu_custom_call.1']
    #allocation4 [shape = 's32[1]{0}', space=sflag, size = 0x4, scoped, tag = 'scoped memory for tpu_custom_call.1']
    #allocation5 [shape = 'u8[512]{0}', space=vmem, size = 0x400, scoped, tag = 'output window, operand 0, single buffered']
    %6 = vsyncpa [#allocation3], 0
    %7 = vsyncpa [#allocation4], 0
    // Predicated region
    $region2: #{tpu_custom_call.1} parent=1 // pred_check
      _
    $region3: #{tpu_custom_call.1} parent=1 // pred_check_branch
      %9 = sbr.rel (0) target = $region5
    $region4: #{tpu_custom_call.1} parent=1 // pred_region
      %s11 = ssub.s32 640, 640
      %12 = vsyncadd [#allocation3], %s11
      %s13 = sshll.u32 [#allocation2], 4
      %s14 = int_to_ptr.vmem [resolvable:$true] %s13
      %19 = dma.hbm_to_vmem [thread:$0]  %s0, 640, %s14, [#allocation3], 128, 128, 8
    $region5: #{tpu_custom_call.1} parent=1 // pred_fallthru
      _
    // Predicated region
    $region6: #{tpu_custom_call.1} parent=1 // pred_check
      _
    $region7: #{tpu_custom_call.1} parent=1 // pred_check_branch
      %21 = sbr.rel (0) target = $region9
    $region8: #{tpu_custom_call.1} parent=1 // pred_region
      %22 = dma.done [#allocation3], 640
    $region9: #{tpu_custom_call.1} parent=1 // pred_fallthru
      _
    %v23 = vld [vmem:[#allocation2] sm:$0xff]
    %v24 = vld [vmem:[#allocation2 + $0x8] sm:$0x3]
    %v25 = vld [vmem:[#allocation2 + $0x10] sm:$0xff]
    %v26 = vld [vmem:[#allocation2 + $0x18] sm:$0x3]
    %v27 = vld [vmem:[#allocation2 + $0x20] sm:$0x1]
    %v28 = vld [vmem:[#allocation2 + $0x21] sm:$0x1]
    %v29 = vld [vmem:[#allocation2 + $0x22] sm:$0x1]
    %v30 = vmul.f32 %v27, %v23
    %vm31 = vcmask 73728
    %v32 = vsel %vm31, %v30, 0.0
    %33 = vadd.xlane.f32.xlu0 %v32
    %v34 = vpop.xlane.xlu0 %33
    %v35 = vlaneseq
    %v36 = vshrl.u32 %v35, 7
    %v37 = vsub.s32 0, %v36
    %v38 = vrot.slane %v34, %v37
    %v39 = vmul.f32 %v38, %v25
    %v40 = vmul.f32 %v38, %v26
    %vm41 = vcmask 80896
    %v42 = vsel %vm41, %v39, -inf
    %43 = vmax.xlane.f32.xlu0 %v42
    %v44 = vpop.xlane.xlu0 %43
    %vm45 = vcmask 74752
    %v46 = vsel %vm45, %v40, -inf
    %47 = vmax.xlane.f32.xlu0 %v46
    %v48 = vpop.xlane.xlu0 %47
    %v49 = vsub.f32 %v39, %v44
    %v50 = vsub.f32 %v40, %v48
    %v51 = vmul.f32 %v49, 1.442695
    %v52 = vpow.pop %v51
    %v53 = vmul.f32 %v50, 1.442695
    %v54 = vpow.pop %v53
    %v55 = vsel %vm41, %v52, 0.0
    %56 = vadd.xlane.f32.xlu0 %v55
    %v57 = vpop.xlane.xlu0 %56
    %v58 = vsel %vm45, %v54, 0.0
    %59 = vadd.xlane.f32.xlu0 %v58
    %v60 = vpop.xlane.xlu0 %59
    %v61 = vrcp.pop %v57
    %v62 = vrcp.pop %v60
    %v63 = vmul.f32 %v52, %v61
    %v64 = vmul.f32 %v54, %v62
    %66 = vset.pattern.permute.xlu0 16
    %67 = vperm.xlu0 %66, %v23
    %v68 = vpop.permute.xlu0 %67
    %71 = vset.pattern.permute.xlu0 16
    %72 = vperm.xlu0 %71, %v24
    %v73 = vpop.permute.xlu0 %72
    %v75 = vmul.f32 %v23, %v68
    %v76 = vmul.f32 %v24, %v73
    %v77 = vsel %vm41, %v75, 0.0
    %v78 = vsel %vm45, %v76, 0.0
    %v79 = vadd.f32 %v77, %v78
    %v80 = vrot.slane %v79, 4
    %v81 = vadd.f32 %v79, %v80
    %v82 = vrot.slane %v81, 2
    %v83 = vadd.f32 %v81, %v82
    %v84 = vrot.slane %v83, 1
    %v85 = vadd.f32 %v83, %v84
    %v86 = vadd.f32 %v28, %v85
    %88 = vset.pattern.permute.xlu0 0
    %89 = vperm.xlu0 %88, %v29
    %v90 = vpop.permute.xlu0 %89
    %v92 = vadd.f32 %v86, %v90
    %93 = vset.pattern.permute.xlu0 17
    %94 = vperm.xlu0 %93, %v23
    %v95 = vpop.permute.xlu0 %94
    %97 = vset.pattern.permute.xlu0 17
    %98 = vperm.xlu0 %97, %v24
    %v99 = vpop.permute.xlu0 %98
    %v101 = vmul.f32 %v95, %v63
    %v102 = vmul.f32 %v99, %v64
    %v103 = vlaneseq
    %v104 = vshrl.u32 %v103, 7
    %v105 = vsub.s32 0, %v104
    %v106 = vrot.slane %v92, %v105
    %v107 = vmul.f32 %v101, %v106
    %v108 = vmul.f32 %v102, %v106
    %v109 = vsel %vm41, %v107, 0.0
    %110 = vadd.xlane.f32.xlu0 %v109
    %v111 = vpop.xlane.xlu0 %110
    %v112 = vsel %vm45, %v108, 0.0
    %113 = vadd.xlane.f32.xlu0 %v112
    %v114 = vpop.xlane.xlu0 %113
    %vm115 = vcmask 1041408
    %v116 = vsel %vm115, %v114, 0.0
    %v117 = vadd.f32 %v111, %v116
    %v118 = vrot.slane %v117, 4
    %v119 = vadd.f32 %v117, %v118
    %v120 = vrot.slane %v119, 2
    %v121 = vadd.f32 %v119, %v120
    %v122 = vrot.slane %v121, 1
    %v123 = vadd.f32 %v121, %v122
    %v124 = vadd.f32 %v123, %v29
    %126 = vset.pattern.permute.xlu0 0
    %127 = vperm.xlu0 %126, %v124
    %v128 = vpop.permute.xlu0 %127
    %130 = vst [vmem:[#allocation5] sm:$0x1] %v128
    // Predicated region
    $region10: #{tpu_custom_call.1} parent=1 // pred_check
      _
    $region11: #{tpu_custom_call.1} parent=1 // pred_check_branch
      %132 = sbr.rel (0) target = $region13
    $region12: #{tpu_custom_call.1} parent=1 // pred_region
      %s134 = ssub.s32 16, 16
      %135 = vsyncadd [#allocation4], %s134
      %s137 = sshll.u32 [#allocation5], 4
      %s138 = int_to_ptr.vmem [resolvable:$true] %s137
      %140 = dma.vmem_to_hbm [thread:$0]  %s138, 16, %s1, [#allocation4]
    $region13: #{tpu_custom_call.1} parent=1 // pred_fallthru
      _
    // Predicated region
    $region14: #{tpu_custom_call.1} parent=1 // pred_check
      _
    $region15: #{tpu_custom_call.1} parent=1 // pred_check_branch
      %142 = sbr.rel (0) target = $region17
    $region16: #{tpu_custom_call.1} parent=1 // pred_region
      %143 = dma.done [#allocation4], 16
    $region17: #{tpu_custom_call.1} parent=1 // pred_fallthru
      _
    %144 = vsyncpa [#allocation3], 1
    %145 = vsyncpa [#allocation4], 1

</llo_original>
